<compile_context>
chip_gen: v7x
topology: tpu7x:2x2x1
jax: 0.10.0
libtpu: 0.0.40
codegen_flags: <defaults>
</compile_context>

<pallas_src>
import jax
import jax.numpy as jnp
from jax.experimental import pallas as pl
from jax.experimental.pallas import tpu as pltpu


A_PAD = 128       # lane-dense padded action dimension
MAX_TB = 1024     # upper bound on the batch tile (keeps VMEM tiny anyway)
NEG_INF = -1e30   # mask value baked into the padded fc3 bias columns


def _round_up(a, b):
    return b * (-(-a // b))


def _choose_tb(batch, max_tb=MAX_TB):
    """Pick the batch tile: as large as useful, >=2 grid steps when possible."""
    b128 = _round_up(max(batch, 1), 128)
    tb = min(max_tb, b128)
    # v7x megacore: the "parallel" grid axis only shards across the 2 TCs if
    # there are >= 2 grid steps; split the batch when it spans >= 2 base tiles.
    if b128 >= 2 * 128 and b128 // tb < 2:
        tb = min(max_tb, 128 * max(1, (b128 // 128) // 2))
    return tb


def policy_net_kernel(x_ref, w1_ref, b1_ref, w2_ref, b2_ref, w3_ref, b3_ref,
                      out_ref):
    """One (TB, ...) batch tile of the MLP + softmax head."""
    x = x_ref[...]  # (TB, state_pad), bf16

    # fc1 + ReLU  (bf16 MXU matmul, f32 accumulate / elementwise)
    h = jnp.dot(x, w1_ref[...], preferred_element_type=jnp.float32) + b1_ref[...]
    h = jnp.maximum(h, 0.0)

    # fc2 + ReLU
    h = jnp.dot(h.astype(jnp.bfloat16), w2_ref[...],
                preferred_element_type=jnp.float32) + b2_ref[...]
    h = jnp.maximum(h, 0.0)

    # fc3 logits, padded out to A_PAD lanes.  Padded weight columns are zero
    # and padded bias columns are -1e30, so padded logits are pre-masked and
    # no in-kernel iota/compare/where is needed.
    logits = jnp.dot(h.astype(jnp.bfloat16), w3_ref[...],
                     preferred_element_type=jnp.float32) + b3_ref[...]

    # Numerically stable softmax over dim=1 (padded lanes: exp underflows to 0).
    m = jnp.max(logits, axis=1, keepdims=True)
    e = jnp.exp(logits - m)
    denom = jnp.sum(e, axis=1, keepdims=True)
    out_ref[...] = (e / denom).astype(out_ref.dtype)


def policy_net_forward(x, params, *, max_tb=MAX_TB):
    """Batched forward pass: pads batch/state/action dims, grids over batch."""
    w1, b1, w2, b2, w3, b3 = params
    batch, state_dim = x.shape
    hidden = w1.shape[1]
    action_dim = w3.shape[1]
    assert action_dim <= A_PAD

    tb = _choose_tb(batch, max_tb)
    padded_batch = _round_up(batch, tb)
    state_pad = _round_up(state_dim, 32)   # clean bf16 sublane packing for fc1

    # Pad batch rows / state cols; cast matmul operands to bf16.
    xp = jnp.pad(x, ((0, padded_batch - batch),
                     (0, state_pad - state_dim))).astype(jnp.bfloat16)
    w1b = jnp.pad(w1, ((0, state_pad - state_dim), (0, 0))).astype(jnp.bfloat16)
    w2b = w2.astype(jnp.bfloat16)
    w3p = jnp.pad(w3, ((0, 0), (0, A_PAD - action_dim))).astype(jnp.bfloat16)
    # Padded bias lanes carry -1e30 -> padded logits are masked before softmax.
    b3p = jnp.pad(b3, ((0, 0), (0, A_PAD - action_dim)),
                  constant_values=NEG_INF)  # stays f32

    grid = (padded_batch // tb,)

    flops = 2 * padded_batch * (state_pad * hidden + hidden * hidden
                                + hidden * A_PAD)
    bytes_accessed = (xp.size * 2 + w1b.size * 2 + w2b.size * 2 + w3p.size * 2
                      + b1.size * 4 + b2.size * 4 + b3p.size * 4
                      + padded_batch * A_PAD * 2)   # bf16 output writeback
    transcendentals = padded_batch * A_PAD

    out = pl.pallas_call(
        policy_net_kernel,
        out_shape=jax.ShapeDtypeStruct((padded_batch, A_PAD), jnp.bfloat16),
        grid=grid,
        in_specs=[
            # activations: one batch tile per grid step (pipelined)
            pl.BlockSpec((tb, state_pad), lambda i: (i, 0)),
            # weights / biases: full arrays, VMEM-resident across all steps
            pl.BlockSpec((state_pad, hidden), lambda i: (0, 0)),
            pl.BlockSpec((1, hidden), lambda i: (0, 0)),
            pl.BlockSpec((hidden, hidden), lambda i: (0, 0)),
            pl.BlockSpec((1, hidden), lambda i: (0, 0)),
            pl.BlockSpec((hidden, A_PAD), lambda i: (0, 0)),
            pl.BlockSpec((1, A_PAD), lambda i: (0, 0)),
        ],
        # lane-dense output block: full 128-wide last dim -> unmasked stores
        out_specs=pl.BlockSpec((tb, A_PAD), lambda i: (i, 0)),
        compiler_params=pltpu.CompilerParams(
            dimension_semantics=("parallel",)),
        cost_estimate=pl.CostEstimate(flops=flops,
                                      transcendentals=transcendentals,
                                      bytes_accessed=bytes_accessed),
    )(xp, w1b, b1, w2b, b2, w3p, b3p)

    # Drop batch/lane padding; return f32 like the PyTorch module.
    return out[:batch, :action_dim].astype(jnp.float32)


def init_params(key, state_dim, hidden_dim, action_dim):
    """torch.nn.Linear-style init: U(-1/sqrt(fan_in), 1/sqrt(fan_in)).

    Weights stored as (in_features, out_features) so the kernel does x @ W + b.
    """
    ks = jax.random.split(key, 6)

    def lin(kw, kb, fan_in, fan_out):
        bound = 1.0 / jnp.sqrt(float(fan_in))
        w = jax.random.uniform(kw, (fan_in, fan_out), jnp.float32, -bound, bound)
        b = jax.random.uniform(kb, (1, fan_out), jnp.float32, -bound, bound)
        return w, b

    w1, b1 = lin(ks[0], ks[1], state_dim, hidden_dim)
    w2, b2 = lin(ks[2], ks[3], hidden_dim, hidden_dim)
    w3, b3 = lin(ks[4], ks[5], hidden_dim, action_dim)
    return (w1, b1, w2, b2, w3, b3)


def ref_forward(x, params):
    """Pure-JAX reference using the same bf16-matmul / f32-accumulate recipe."""
    w1, b1, w2, b2, w3, b3 = params
    bf = jnp.bfloat16
    h = jnp.maximum(
        jnp.dot(x.astype(bf), w1.astype(bf),
                preferred_element_type=jnp.float32) + b1, 0.0)
    h = jnp.maximum(
        jnp.dot(h.astype(bf), w2.astype(bf),
                preferred_element_type=jnp.float32) + b2, 0.0)
    logits = jnp.dot(h.astype(bf), w3.astype(bf),
                     preferred_element_type=jnp.float32) + b3
    return jax.nn.softmax(logits, axis=1)


if __name__ == "__main__":
    # Small shapes consistent with the Combat env setup in the module:
    #   hidden_dim = 64, action_dim = 5 + n_opponents = 7, state_dim synthetic.
    batch = 4
    state_dim = 30
    hidden_dim = 64
    action_dim = 7

    key = jax.random.PRNGKey(0)
    k_x, k_p = jax.random.split(key)

    x = jax.random.normal(k_x, (batch, state_dim), dtype=jnp.float32)
    params = init_params(k_p, state_dim, hidden_dim, action_dim)

    out = policy_net_forward(x, params)
    out = jax.block_until_ready(out)

    ref = ref_forward(x, params)

    # Tolerance covers bf16 output rounding (~4e-3 rel) on top of the
    # shared bf16-matmul recipe.
    assert out.shape == (batch, action_dim), "bad output shape"
    assert jnp.allclose(out, ref, atol=1e-2), "mismatch vs JAX reference"
    assert jnp.allclose(jnp.sum(out, axis=1), 1.0, atol=1e-2), "rows must sum to 1"

    # Also exercise a larger batch so the multi-step / multi-tile path runs.
    big = 3000
    xb = jax.random.normal(k_x, (big, state_dim), dtype=jnp.float32)
    outb = jax.block_until_ready(policy_net_forward(xb, params))
    refb = ref_forward(xb, params)
    assert outb.shape == (big, action_dim), "bad output shape (big batch)"
    assert jnp.allclose(outb, refb, atol=1e-2), "mismatch vs reference (big batch)"

    print("KERNEL_OK")
</pallas_src>

<mosaic_0001>
module attributes {stable_mosaic.version = 11 : i64} {
  func.func @policy_net_kernel(%arg0: i32, %arg1: memref<128x32xbf16, #tpu.memory_space<vmem>>, %arg2: memref<32x64xbf16, #tpu.memory_space<vmem>>, %arg3: memref<1x64xf32, #tpu.memory_space<vmem>>, %arg4: memref<64x64xbf16, #tpu.memory_space<vmem>>, %arg5: memref<1x64xf32, #tpu.memory_space<vmem>>, %arg6: memref<64x128xbf16, #tpu.memory_space<vmem>>, %arg7: memref<1x128xf32, #tpu.memory_space<vmem>>, %arg8: memref<128x128xbf16, #tpu.memory_space<vmem>>) attributes {dimension_semantics = [#tpu.dimension_semantics<parallel>], iteration_bounds = array<i64: 1>, scalar_prefetch = 0 : i64, scratch_operands = 0 : i64, tpu.core_type = #tpu.core_type<tc>, window_params = [{transform_indices = @transform_0, window_bounds = array<i64: 128, 32>}, {pipeline_mode = #tpu.pipeline_mode<synchronous>, transform_indices = @transform_1, window_bounds = array<i64: 32, 64>}, {pipeline_mode = #tpu.pipeline_mode<synchronous>, transform_indices = @transform_2, window_bounds = array<i64: 1, 64>}, {pipeline_mode = #tpu.pipeline_mode<synchronous>, transform_indices = @transform_3, window_bounds = array<i64: 64, 64>}, {pipeline_mode = #tpu.pipeline_mode<synchronous>, transform_indices = @transform_4, window_bounds = array<i64: 1, 64>}, {pipeline_mode = #tpu.pipeline_mode<synchronous>, transform_indices = @transform_5, window_bounds = array<i64: 64, 128>}, {pipeline_mode = #tpu.pipeline_mode<synchronous>, transform_indices = @transform_6, window_bounds = array<i64: 1, 128>}, {transform_indices = @transform_7, window_bounds = array<i64: 128, 128>}]} {
    %c0 = arith.constant 0 : index
    %c0_0 = arith.constant 0 : index
    %0 = vector.load %arg1[%c0, %c0_0] : memref<128x32xbf16, #tpu.memory_space<vmem>>, vector<128x32xbf16>
    %c0_1 = arith.constant 0 : index
    %c0_2 = arith.constant 0 : index
    %1 = vector.load %arg2[%c0_1, %c0_2] : memref<32x64xbf16, #tpu.memory_space<vmem>>, vector<32x64xbf16>
    %cst = arith.constant dense<0.000000e+00> : vector<128x64xf32>
    %2 = tpu.matmul %0, %1, %cst {dimension_numbers = #tpu.dot_dimension_numbers<[1], [0], [0], [1], [0, 0, 1, 1], [], []>} : vector<128x32xbf16>, vector<32x64xbf16>, vector<128x64xf32> -> vector<128x64xf32>
    %c0_3 = arith.constant 0 : index
    %c0_4 = arith.constant 0 : index
    %3 = vector.load %arg3[%c0_3, %c0_4] : memref<1x64xf32, #tpu.memory_space<vmem>>, vector<1x64xf32>
    %4 = vector.broadcast %3 : vector<1x64xf32> to vector<128x64xf32>
    %5 = arith.addf %2, %4 : vector<128x64xf32>
    %cst_5 = arith.constant 0.000000e+00 : f32
    %6 = vector.broadcast %cst_5 : f32 to vector<128x64xf32>
    %7 = arith.maximumf %5, %6 : vector<128x64xf32>
    %8 = arith.truncf %7 : vector<128x64xf32> to vector<128x64xbf16>
    %c0_6 = arith.constant 0 : index
    %c0_7 = arith.constant 0 : index
    %9 = vector.load %arg4[%c0_6, %c0_7] : memref<64x64xbf16, #tpu.memory_space<vmem>>, vector<64x64xbf16>
    %cst_8 = arith.constant dense<0.000000e+00> : vector<128x64xf32>
    %10 = tpu.matmul %8, %9, %cst_8 {dimension_numbers = #tpu.dot_dimension_numbers<[1], [0], [0], [1], [0, 0, 1, 1], [], []>} : vector<128x64xbf16>, vector<64x64xbf16>, vector<128x64xf32> -> vector<128x64xf32>
    %c0_9 = arith.constant 0 : index
    %c0_10 = arith.constant 0 : index
    %11 = vector.load %arg5[%c0_9, %c0_10] : memref<1x64xf32, #tpu.memory_space<vmem>>, vector<1x64xf32>
    %12 = vector.broadcast %11 : vector<1x64xf32> to vector<128x64xf32>
    %13 = arith.addf %10, %12 : vector<128x64xf32>
    %cst_11 = arith.constant 0.000000e+00 : f32
    %14 = vector.broadcast %cst_11 : f32 to vector<128x64xf32>
    %15 = arith.maximumf %13, %14 : vector<128x64xf32>
    %16 = arith.truncf %15 : vector<128x64xf32> to vector<128x64xbf16>
    %c0_12 = arith.constant 0 : index
    %c0_13 = arith.constant 0 : index
    %17 = vector.load %arg6[%c0_12, %c0_13] : memref<64x128xbf16, #tpu.memory_space<vmem>>, vector<64x128xbf16>
    %cst_14 = arith.constant dense<0.000000e+00> : vector<128x128xf32>
    %18 = tpu.matmul %16, %17, %cst_14 {dimension_numbers = #tpu.dot_dimension_numbers<[1], [0], [0], [1], [0, 0, 1, 1], [], []>} : vector<128x64xbf16>, vector<64x128xbf16>, vector<128x128xf32> -> vector<128x128xf32>
    %c0_15 = arith.constant 0 : index
    %c0_16 = arith.constant 0 : index
    %19 = vector.load %arg7[%c0_15, %c0_16] : memref<1x128xf32, #tpu.memory_space<vmem>>, vector<1x128xf32>
    %20 = vector.broadcast %19 : vector<1x128xf32> to vector<128x128xf32>
    %21 = arith.addf %18, %20 : vector<128x128xf32>
    %cst_17 = arith.constant dense<0xFF800000> : vector<128xf32>
    %22 = vector.multi_reduction <maximumf>, %21, %cst_17 [1] : vector<128x128xf32> to vector<128xf32>
    %23 = vector.shape_cast %22 : vector<128xf32> to vector<128x1xf32>
    %24 = vector.broadcast %23 : vector<128x1xf32> to vector<128x128xf32>
    %25 = arith.subf %21, %24 : vector<128x128xf32>
    %26 = math.exp %25 : vector<128x128xf32>
    %cst_18 = arith.constant dense<0.000000e+00> : vector<128xf32>
    %27 = vector.multi_reduction <add>, %26, %cst_18 [1] : vector<128x128xf32> to vector<128xf32>
    %28 = vector.shape_cast %27 : vector<128xf32> to vector<128x1xf32>
    %29 = vector.broadcast %28 : vector<128x1xf32> to vector<128x128xf32>
    %30 = arith.divf %26, %29 : vector<128x128xf32>
    %31 = arith.truncf %30 : vector<128x128xf32> to vector<128x128xbf16>
    %c0_19 = arith.constant 0 : index
    %c0_20 = arith.constant 0 : index
    %32 = vector.load %arg8[%c0_19, %c0_20] : memref<128x128xbf16, #tpu.memory_space<vmem>>, vector<128x128xbf16>
    tpu.vector_store %arg8[%c0_19, %c0_20], %31 {strides = array<i32>} : memref<128x128xbf16, #tpu.memory_space<vmem>>, vector<128x128xbf16>,
    return
  }
  func.func @transform_0(%arg0: i32) -> (i32, i32) {
    %c0_i32 = arith.constant 0 : i32
    %c0_i32_0 = arith.constant 0 : i32
    return %arg0, %c0_i32 : i32, i32
  }
  func.func @transform_1(%arg0: i32) -> (i32, i32) {
    %c0_i32 = arith.constant 0 : i32
    %c0_i32_0 = arith.constant 0 : i32
    %c0_i32_1 = arith.constant 0 : i32
    return %c0_i32, %c0_i32_0 : i32, i32
  }
  func.func @transform_2(%arg0: i32) -> (i32, i32) {
    %c0_i32 = arith.constant 0 : i32
    %c0_i32_0 = arith.constant 0 : i32
    %c0_i32_1 = arith.constant 0 : i32
    return %c0_i32, %c0_i32_0 : i32, i32
  }
  func.func @transform_3(%arg0: i32) -> (i32, i32) {
    %c0_i32 = arith.constant 0 : i32
    %c0_i32_0 = arith.constant 0 : i32
    %c0_i32_1 = arith.constant 0 : i32
    return %c0_i32, %c0_i32_0 : i32, i32
  }
  func.func @transform_4(%arg0: i32) -> (i32, i32) {
    %c0_i32 = arith.constant 0 : i32
    %c0_i32_0 = arith.constant 0 : i32
    %c0_i32_1 = arith.constant 0 : i32
    return %c0_i32, %c0_i32_0 : i32, i32
  }
  func.func @transform_5(%arg0: i32) -> (i32, i32) {
    %c0_i32 = arith.constant 0 : i32
    %c0_i32_0 = arith.constant 0 : i32
    %c0_i32_1 = arith.constant 0 : i32
    return %c0_i32, %c0_i32_0 : i32, i32
  }
  func.func @transform_6(%arg0: i32) -> (i32, i32) {
    %c0_i32 = arith.constant 0 : i32
    %c0_i32_0 = arith.constant 0 : i32
    %c0_i32_1 = arith.constant 0 : i32
    return %c0_i32, %c0_i32_0 : i32, i32
  }
  func.func @transform_7(%arg0: i32) -> (i32, i32) {
    %c0_i32 = arith.constant 0 : i32
    %c0_i32_0 = arith.constant 0 : i32
    return %arg0, %c0_i32 : i32, i32
  }
}

</mosaic_0001>

<llo_original>
// kernel: tpu_custom_call.1
$region0: #{tpu_custom_call.1}
  #allocation0 [shape = 'u32[]', space=smem, size = 0x4, offset = 0x4, fixed_abs, tag = 'smem constant byte address 0x4 - core index']
  #allocation1 [shape = 'u32[144,128]{1,0:T(1,128)}', space=vmem, size = 0x12000, scoped, tag = 'internal scratch']
  %s0 = inlined_call_operand.vmem [shape: bf16[128,32], index: 0, kind: input, shape index: {}]
  %s1 = inlined_call_operand.vmem [shape: bf16[32,64], index: 1, kind: input, shape index: {}]
  %s2 = inlined_call_operand.vmem [shape: f32[1,64], index: 2, kind: input, shape index: {}]
  %s3 = inlined_call_operand.vmem [shape: bf16[64,64], index: 3, kind: input, shape index: {}]
  %s4 = inlined_call_operand.vmem [shape: f32[1,64], index: 4, kind: input, shape index: {}]
  %s5 = inlined_call_operand.vmem [shape: bf16[64,128], index: 5, kind: input, shape index: {}]
  %s6 = inlined_call_operand.vmem [shape: f32[1,128], index: 6, kind: input, shape index: {}]
  %s7 = inlined_call_operand.hbm [shape: bf16[128,128], index: 7, kind: output, shape index: {}]
  %s8 = sld [smem:[#allocation0]]
  $region38: #{tpu_custom_call.1} parent=0
    _
  %s10 = ssub.s32 1, %s8
  %s11 = scalar_select 0, %s10, %s8
  $region1: #{tpu_custom_call.1} parent=0
    #allocation2 [shape = 'u8[32768]{0}', space=vmem, size = 0x8000, scoped, tag = 'output window, operand 0, single buffered']
    #allocation3 [shape = 's32[1]{0}', space=sflag, size = 0x4, scoped, tag = 'scoped memory for tpu_custom_call.1']
    %12 = vsyncpa [#allocation3], 0
    // Predicated region
    $region2: #{tpu_custom_call.1} parent=1 // pred_check
      _
    $region3: #{tpu_custom_call.1} parent=1 // pred_check_branch
      %14 = sbr.rel (0) target = $region5
    $region4: #{tpu_custom_call.1} parent=1 // pred_region
      _
    $region5: #{tpu_custom_call.1} parent=1 // pred_fallthru
      _
    // Predicated region
    $region6: #{tpu_custom_call.1} parent=1 // pred_check
      _
    $region7: #{tpu_custom_call.1} parent=1 // pred_check_branch
      %16 = sbr.rel (0) target = $region9
    $region8: #{tpu_custom_call.1} parent=1 // pred_region
      _
    $region9: #{tpu_custom_call.1} parent=1 // pred_fallthru
      _
    // Predicated region
    $region10: #{tpu_custom_call.1} parent=1 // pred_check
      _
    $region11: #{tpu_custom_call.1} parent=1 // pred_check_branch
      %18 = sbr.rel (0) target = $region13
    $region12: #{tpu_custom_call.1} parent=1 // pred_region
      _
    $region13: #{tpu_custom_call.1} parent=1 // pred_fallthru
      _
    // Predicated region
    $region14: #{tpu_custom_call.1} parent=1 // pred_check
      _
    $region15: #{tpu_custom_call.1} parent=1 // pred_check_branch
      %20 = sbr.rel (0) target = $region17
    $region16: #{tpu_custom_call.1} parent=1 // pred_region
      _
    $region17: #{tpu_custom_call.1} parent=1 // pred_fallthru
      _
    // Predicated region
    $region18: #{tpu_custom_call.1} parent=1 // pred_check
      _
    $region19: #{tpu_custom_call.1} parent=1 // pred_check_branch
      %22 = sbr.rel (0) target = $region21
    $region20: #{tpu_custom_call.1} parent=1 // pred_region
      _
    $region21: #{tpu_custom_call.1} parent=1 // pred_fallthru
      _
    // Predicated region
    $region22: #{tpu_custom_call.1} parent=1 // pred_check
      _
    $region23: #{tpu_custom_call.1} parent=1 // pred_check_branch
      %24 = sbr.rel (0) target = $region25
    $region24: #{tpu_custom_call.1} parent=1 // pred_region
      _
    $region25: #{tpu_custom_call.1} parent=1 // pred_fallthru
      _
    // Predicated region
    $region26: #{tpu_custom_call.1} parent=1 // pred_check
      _
    $region27: #{tpu_custom_call.1} parent=1 // pred_check_branch
      %26 = sbr.rel (0) target = $region29
    $region28: #{tpu_custom_call.1} parent=1 // pred_region
      _
    $region29: #{tpu_custom_call.1} parent=1 // pred_fallthru
      _
    %v28 = vld [vmem:[%s0] sm:$0xf]
    %v29 = vld [vmem:[%s0 + $0x4] sm:$0xf]
    %v30 = vld [vmem:[%s0 + $0x8] sm:$0xf]
    %v31 = vld [vmem:[%s0 + $0xc] sm:$0xf]
    %v32 = vld [vmem:[%s0 + $0x10] sm:$0xf]
    %v33 = vld [vmem:[%s0 + $0x14] sm:$0xf]
    %v34 = vld [vmem:[%s0 + $0x18] sm:$0xf]
    %v35 = vld [vmem:[%s0 + $0x1c] sm:$0xf]
    %v36 = vld [vmem:[%s0 + $0x20] sm:$0xf]
    %v37 = vld [vmem:[%s0 + $0x24] sm:$0xf]
    %v38 = vld [vmem:[%s0 + $0x28] sm:$0xf]
    %v39 = vld [vmem:[%s0 + $0x2c] sm:$0xf]
    %v40 = vld [vmem:[%s0 + $0x30] sm:$0xf]
    %v41 = vld [vmem:[%s0 + $0x34] sm:$0xf]
    %v42 = vld [vmem:[%s0 + $0x38] sm:$0xf]
    %v43 = vld [vmem:[%s0 + $0x3c] sm:$0xf]
    %v44 = vld [vmem:[%s1] sm:$0xf]
    %v45 = vld [vmem:[%s1 + $0x4] sm:$0xf]
    %v46 = vld [vmem:[%s1 + $0x8] sm:$0xf]
    %v47 = vld [vmem:[%s1 + $0xc] sm:$0xf]
    %v48 = vld [vmem:[%s2] sm:$0x1]
    %v50 = vlaneseq
    %v51 = vshrl.u32 %v50, 7
    %v52 = vsub.s32 0, %v51
    %v53 = vrot.slane %v48, %v52
    %v71 = vunpack.c.l.b16 %v28
    %v72 = vunpack.c.l.b16 %v29
    %v73 = vunpack.c.l.b16 %v30
    %v74 = vunpack.c.l.b16 %v31
    %v75 = vunpack.c.l.b16 %v32
    %v76 = vunpack.c.l.b16 %v33
    %v77 = vunpack.c.l.b16 %v34
    %v78 = vunpack.c.l.b16 %v35
    %v79 = vunpack.c.l.b16 %v36
    %v80 = vunpack.c.l.b16 %v37
    %v81 = vunpack.c.l.b16 %v38
    %v82 = vunpack.c.l.b16 %v39
    %v83 = vunpack.c.l.b16 %v40
    %v84 = vunpack.c.l.b16 %v41
    %v85 = vunpack.c.l.b16 %v42
    %v86 = vunpack.c.l.b16 %v43
    %v87 = vpack.c.b16 %v72, %v71
    %v88 = vpack.c.b16 %v74, %v73
    %v89 = vpack.c.b16 %v76, %v75
    %v90 = vpack.c.b16 %v78, %v77
    %v91 = vpack.c.b16 %v80, %v79
    %v92 = vpack.c.b16 %v82, %v81
    %v93 = vpack.c.b16 %v84, %v83
    %v94 = vpack.c.b16 %v86, %v85
    %v99 = vunpack.c.l.b16 %v44
    %v100 = vunpack.c.l.b16 %v45
    %v101 = vunpack.c.l.b16 %v46
    %v102 = vunpack.c.l.b16 %v47
    %v103 = vpack.c.b16 %v100, %v99
    %v104 = vpack.c.b16 %v102, %v101
    %vm107 = vcmask 261120
    %v109 = vsel %vm107, %v87, 0
    %v112 = vsel %vm107, %v88, 0
    %v115 = vsel %vm107, %v89, 0
    %v118 = vsel %vm107, %v90, 0
    %v121 = vsel %vm107, %v91, 0
    %v124 = vsel %vm107, %v92, 0
    %v127 = vsel %vm107, %v93, 0
    %v130 = vsel %vm107, %v94, 0
    %132 = vmatprep.subr.bf16.mxu0 0
    %133 = vmatpush1.bf16.msra.mxu0 %v103
    %134 = vmatprep.subr.bf16.mxu0 0
    %135 = vmatpush1.bf16.msra.mxu0 %v104
    %136 = vmatprep.subr.bf16.mxu0 0
    %137 = vmatpush1.bf16.msra.mxu0 0
    %138 = vmatprep.subr.bf16.mxu0 0
    %139 = vmatpush1.bf16.msra.mxu0 0
    %140 = vmatprep.subr.bf16.mxu0 0
    %141 = vmatpush1.bf16.msra.mxu0 0
    %142 = vmatprep.subr.bf16.mxu0 0
    %143 = vmatpush1.bf16.msra.mxu0 0
    %144 = vmatprep.subr.bf16.mxu0 0
    %145 = vmatpush1.bf16.msra.mxu0 0
    %146 = vmatprep.subr.bf16.mxu0 0
    %147 = vmatpush1.bf16.msra.mxu0 0
    %148 = vmatprep.subr.bf16.mxu0 0
    %149 = vmatpush1.bf16.msra.mxu0 0
    %150 = vmatprep.subr.bf16.mxu0 0
    %151 = vmatpush1.bf16.msra.mxu0 0
    %152 = vmatprep.subr.bf16.mxu0 0
    %153 = vmatpush1.bf16.msra.mxu0 0
    %154 = vmatprep.subr.bf16.mxu0 0
    %155 = vmatpush1.bf16.msra.mxu0 0
    %156 = vmatprep.subr.bf16.mxu0 0
    %157 = vmatpush1.bf16.msra.mxu0 0
    %158 = vmatprep.subr.bf16.mxu0 0
    %159 = vmatpush1.bf16.msra.mxu0 0
    %160 = vmatprep.subr.bf16.mxu0 0
    %161 = vmatpush1.bf16.msra.mxu0 0
    %162 = vmatprep.subr.bf16.mxu0 0
    %163 = vmatpush1.bf16.msra.mxu0 0
    %164 = vmatprep.mubr.bf16.mxu0 0
    %165 = vmatmul.mubr.bf16.gmra.mrb[0].mxu0 %v109
    %v166 = vpop.f32.mrb[0].mxu0
    %v167 = vadd.f32 %v53, %v166
    %v168 = vpop.f32.mrb[0].mxu0
    %v169 = vpop.f32.mrb[0].mxu0
    %v170 = vadd.f32 %v53, %v169
    %v171 = vpop.f32.mrb[0].mxu0
    %172 = vmatprep.mubr.bf16.mxu0 0
    %173 = vmatmul.mubr.bf16.gmra.mrb[0].mxu0 %v112
    %v174 = vpop.f32.mrb[0].mxu0
    %v175 = vadd.f32 %v53, %v174
    %v176 = vpop.f32.mrb[0].mxu0
    %v177 = vpop.f32.mrb[0].mxu0
    %v178 = vadd.f32 %v53, %v177
    %v179 = vpop.f32.mrb[0].mxu0
    %180 = vmatprep.mubr.bf16.mxu0 0
    %181 = vmatmul.mubr.bf16.gmra.mrb[0].mxu0 %v115
    %v182 = vpop.f32.mrb[0].mxu0
    %v183 = vadd.f32 %v53, %v182
    %v184 = vpop.f32.mrb[0].mxu0
    %v185 = vpop.f32.mrb[0].mxu0
    %v186 = vadd.f32 %v53, %v185
    %v187 = vpop.f32.mrb[0].mxu0
    %188 = vmatprep.mubr.bf16.mxu0 0
    %189 = vmatmul.mubr.bf16.gmra.mrb[0].mxu0 %v118
    %v190 = vpop.f32.mrb[0].mxu0
    %v191 = vadd.f32 %v53, %v190
    %v192 = vpop.f32.mrb[0].mxu0
    %v193 = vpop.f32.mrb[0].mxu0
    %v194 = vadd.f32 %v53, %v193
    %v195 = vpop.f32.mrb[0].mxu0
    %196 = vmatprep.mubr.bf16.mxu0 0
    %197 = vmatmul.mubr.bf16.gmra.mrb[0].mxu0 %v121
    %v198 = vpop.f32.mrb[0].mxu0
    %v199 = vadd.f32 %v53, %v198
    %v200 = vpop.f32.mrb[0].mxu0
    %v201 = vpop.f32.mrb[0].mxu0
    %v202 = vadd.f32 %v53, %v201
    %v203 = vpop.f32.mrb[0].mxu0
    %204 = vmatprep.mubr.bf16.mxu0 0
    %205 = vmatmul.mubr.bf16.gmra.mrb[0].mxu0 %v124
    %v206 = vpop.f32.mrb[0].mxu0
    %v207 = vadd.f32 %v53, %v206
    %v208 = vpop.f32.mrb[0].mxu0
    %v209 = vpop.f32.mrb[0].mxu0
    %v210 = vadd.f32 %v53, %v209
    %v211 = vpop.f32.mrb[0].mxu0
    %212 = vmatprep.mubr.bf16.mxu0 0
    %213 = vmatmul.mubr.bf16.gmra.mrb[0].mxu0 %v127
    %v214 = vpop.f32.mrb[0].mxu0
    %v215 = vadd.f32 %v53, %v214
    %v216 = vpop.f32.mrb[0].mxu0
    %v217 = vpop.f32.mrb[0].mxu0
    %v218 = vadd.f32 %v53, %v217
    %v219 = vpop.f32.mrb[0].mxu0
    %220 = vmatprep.mubr.bf16.mxu0 0
    %221 = vmatmul.mubr.bf16.gmra.mrb[0].mxu0 %v130
    %v222 = vpop.f32.mrb[0].mxu0
    %v223 = vadd.f32 %v53, %v222
    %v224 = vpop.f32.mrb[0].mxu0
    %v225 = vpop.f32.mrb[0].mxu0
    %v226 = vadd.f32 %v53, %v225
    %v227 = vpop.f32.mrb[0].mxu0
    %228 = vdwg.mxu0
    %v229 = vmax.f32 %v167, 0.0
    %v230 = vmax.f32 %v170, 0.0
    %v231 = vmax.f32 %v175, 0.0
    %v232 = vmax.f32 %v178, 0.0
    %v233 = vmax.f32 %v183, 0.0
    %v234 = vmax.f32 %v186, 0.0
    %v235 = vmax.f32 %v191, 0.0
    %v236 = vmax.f32 %v194, 0.0
    %v237 = vmax.f32 %v199, 0.0
    %v238 = vmax.f32 %v202, 0.0
    %v239 = vmax.f32 %v207, 0.0
    %v240 = vmax.f32 %v210, 0.0
    %v241 = vmax.f32 %v215, 0.0
    %v242 = vmax.f32 %v218, 0.0
    %v243 = vmax.f32 %v223, 0.0
    %v244 = vmax.f32 %v226, 0.0
    %v245 = vpack.c.bf16 %v230, %v229
    %v246 = vpack.c.bf16 %v232, %v231
    %v247 = vpack.c.bf16 %v234, %v233
    %v248 = vpack.c.bf16 %v236, %v235
    %v249 = vpack.c.bf16 %v238, %v237
    %v250 = vpack.c.bf16 %v240, %v239
    %v251 = vpack.c.bf16 %v242, %v241
    %v252 = vpack.c.bf16 %v244, %v243
    %v253 = vld [vmem:[%s3] sm:$0xf]
    %v254 = vld [vmem:[%s3 + $0x4] sm:$0xf]
    %v255 = vld [vmem:[%s3 + $0x8] sm:$0xf]
    %v256 = vld [vmem:[%s3 + $0xc] sm:$0xf]
    %v257 = vld [vmem:[%s3 + $0x10] sm:$0xf]
    %v258 = vld [vmem:[%s3 + $0x14] sm:$0xf]
    %v259 = vld [vmem:[%s3 + $0x18] sm:$0xf]
    %v260 = vld [vmem:[%s3 + $0x1c] sm:$0xf]
    %v261 = vld [vmem:[%s4] sm:$0x1]
    %v263 = vlaneseq
    %v264 = vshrl.u32 %v263, 7
    %v265 = vsub.s32 0, %v264
    %v266 = vrot.slane %v261, %v265
    %v276 = vunpack.c.l.b16 %v253
    %v277 = vunpack.c.l.b16 %v254
    %v278 = vunpack.c.l.b16 %v255
    %v279 = vunpack.c.l.b16 %v256
    %v280 = vunpack.c.l.b16 %v257
    %v281 = vunpack.c.l.b16 %v258
    %v282 = vunpack.c.l.b16 %v259
    %v283 = vunpack.c.l.b16 %v260
    %v284 = vpack.c.b16 %v277, %v276
    %v285 = vpack.c.b16 %v279, %v278
    %v286 = vpack.c.b16 %v281, %v280
    %v287 = vpack.c.b16 %v283, %v282
    %vm292 = vcmask 523264
    %v294 = vsel %vm292, %v245, 0
    %v297 = vsel %vm292, %v246, 0
    %v300 = vsel %vm292, %v247, 0
    %v303 = vsel %vm292, %v248, 0
    %v306 = vsel %vm292, %v249, 0
    %v309 = vsel %vm292, %v250, 0
    %v312 = vsel %vm292, %v251, 0
    %v315 = vsel %vm292, %v252, 0
    %317 = vmatprep.subr.bf16.mxu0 0
    %318 = vmatpush1.bf16.msra.mxu0 %v284
    %319 = vmatprep.subr.bf16.mxu0 0
    %320 = vmatpush1.bf16.msra.mxu0 %v285
    %321 = vmatprep.subr.bf16.mxu0 0
    %322 = vmatpush1.bf16.msra.mxu0 %v286
    %323 = vmatprep.subr.bf16.mxu0 0
    %324 = vmatpush1.bf16.msra.mxu0 %v287
    %325 = vmatprep.subr.bf16.mxu0 0
    %326 = vmatpush1.bf16.msra.mxu0 0
    %327 = vmatprep.subr.bf16.mxu0 0
    %328 = vmatpush1.bf16.msra.mxu0 0
    %329 = vmatprep.subr.bf16.mxu0 0
    %330 = vmatpush1.bf16.msra.mxu0 0
    %331 = vmatprep.subr.bf16.mxu0 0
    %332 = vmatpush1.bf16.msra.mxu0 0
    %333 = vmatprep.subr.bf16.mxu0 0
    %334 = vmatpush1.bf16.msra.mxu0 0
    %335 = vmatprep.subr.bf16.mxu0 0
    %336 = vmatpush1.bf16.msra.mxu0 0
    %337 = vmatprep.subr.bf16.mxu0 0
    %338 = vmatpush1.bf16.msra.mxu0 0
    %339 = vmatprep.subr.bf16.mxu0 0
    %340 = vmatpush1.bf16.msra.mxu0 0
    %341 = vmatprep.subr.bf16.mxu0 0
    %342 = vmatpush1.bf16.msra.mxu0 0
    %343 = vmatprep.subr.bf16.mxu0 0
    %344 = vmatpush1.bf16.msra.mxu0 0
    %345 = vmatprep.subr.bf16.mxu0 0
    %346 = vmatpush1.bf16.msra.mxu0 0
    %347 = vmatprep.subr.bf16.mxu0 0
    %348 = vmatpush1.bf16.msra.mxu0 0
    %349 = vmatprep.mubr.bf16.mxu0 0
    %350 = vmatmul.mubr.bf16.gmra.mrb[0].mxu0 %v294
    %v351 = vpop.f32.mrb[0].mxu0
    %v352 = vadd.f32 %v266, %v351
    %v353 = vpop.f32.mrb[0].mxu0
    %v354 = vpop.f32.mrb[0].mxu0
    %v355 = vadd.f32 %v266, %v354
    %v356 = vpop.f32.mrb[0].mxu0
    %357 = vmatprep.mubr.bf16.mxu0 0
    %358 = vmatmul.mubr.bf16.gmra.mrb[0].mxu0 %v297
    %v359 = vpop.f32.mrb[0].mxu0
    %v360 = vadd.f32 %v266, %v359
    %v361 = vpop.f32.mrb[0].mxu0
    %v362 = vpop.f32.mrb[0].mxu0
    %v363 = vadd.f32 %v266, %v362
    %v364 = vpop.f32.mrb[0].mxu0
    %365 = vmatprep.mubr.bf16.mxu0 0
    %366 = vmatmul.mubr.bf16.gmra.mrb[0].mxu0 %v300
    %v367 = vpop.f32.mrb[0].mxu0
    %v368 = vadd.f32 %v266, %v367
    %v369 = vpop.f32.mrb[0].mxu0
    %v370 = vpop.f32.mrb[0].mxu0
    %v371 = vadd.f32 %v266, %v370
    %v372 = vpop.f32.mrb[0].mxu0
    %373 = vmatprep.mubr.bf16.mxu0 0
    %374 = vmatmul.mubr.bf16.gmra.mrb[0].mxu0 %v303
    %v375 = vpop.f32.mrb[0].mxu0
    %v376 = vadd.f32 %v266, %v375
    %v377 = vpop.f32.mrb[0].mxu0
    %v378 = vpop.f32.mrb[0].mxu0
    %v379 = vadd.f32 %v266, %v378
    %v380 = vpop.f32.mrb[0].mxu0
    %381 = vmatprep.mubr.bf16.mxu0 0
    %382 = vmatmul.mubr.bf16.gmra.mrb[0].mxu0 %v306
    %v383 = vpop.f32.mrb[0].mxu0
    %v384 = vadd.f32 %v266, %v383
    %v385 = vpop.f32.mrb[0].mxu0
    %v386 = vpop.f32.mrb[0].mxu0
    %v387 = vadd.f32 %v266, %v386
    %v388 = vpop.f32.mrb[0].mxu0
    %389 = vmatprep.mubr.bf16.mxu0 0
    %390 = vmatmul.mubr.bf16.gmra.mrb[0].mxu0 %v309
    %v391 = vpop.f32.mrb[0].mxu0
    %v392 = vadd.f32 %v266, %v391
    %v393 = vpop.f32.mrb[0].mxu0
    %v394 = vpop.f32.mrb[0].mxu0
    %v395 = vadd.f32 %v266, %v394
    %v396 = vpop.f32.mrb[0].mxu0
    %397 = vmatprep.mubr.bf16.mxu0 0
    %398 = vmatmul.mubr.bf16.gmra.mrb[0].mxu0 %v312
    %v399 = vpop.f32.mrb[0].mxu0
    %v400 = vadd.f32 %v266, %v399
    %v401 = vpop.f32.mrb[0].mxu0
    %v402 = vpop.f32.mrb[0].mxu0
    %v403 = vadd.f32 %v266, %v402
    %v404 = vpop.f32.mrb[0].mxu0
    %405 = vmatprep.mubr.bf16.mxu0 0
    %406 = vmatmul.mubr.bf16.gmra.mrb[0].mxu0 %v315
    %v407 = vpop.f32.mrb[0].mxu0
    %v408 = vadd.f32 %v266, %v407
    %v409 = vpop.f32.mrb[0].mxu0
    %v410 = vpop.f32.mrb[0].mxu0
    %v411 = vadd.f32 %v266, %v410
    %v412 = vpop.f32.mrb[0].mxu0
    %413 = vdwg.mxu0
    %v414 = vmax.f32 %v352, 0.0
    %v415 = vmax.f32 %v355, 0.0
    %v416 = vmax.f32 %v360, 0.0
    %v417 = vmax.f32 %v363, 0.0
    %v418 = vmax.f32 %v368, 0.0
    %v419 = vmax.f32 %v371, 0.0
    %v420 = vmax.f32 %v376, 0.0
    %v421 = vmax.f32 %v379, 0.0
    %v422 = vmax.f32 %v384, 0.0
    %v423 = vmax.f32 %v387, 0.0
    %v424 = vmax.f32 %v392, 0.0
    %v425 = vmax.f32 %v395, 0.0
    %v426 = vmax.f32 %v400, 0.0
    %v427 = vmax.f32 %v403, 0.0
    %v428 = vmax.f32 %v408, 0.0
    %v429 = vmax.f32 %v411, 0.0
    %v430 = vpack.c.bf16 %v415, %v414
    %v431 = vpack.c.bf16 %v417, %v416
    %v432 = vpack.c.bf16 %v419, %v418
    %v433 = vpack.c.bf16 %v421, %v420
    %v434 = vpack.c.bf16 %v423, %v422
    %v435 = vpack.c.bf16 %v425, %v424
    %v436 = vpack.c.bf16 %v427, %v426
    %v437 = vpack.c.bf16 %v429, %v428
    %v438 = vld [vmem:[%s5] sm:$0xf]
    %v439 = vld [vmem:[%s5 + $0x4] sm:$0xf]
    %v440 = vld [vmem:[%s5 + $0x8] sm:$0xf]
    %v441 = vld [vmem:[%s5 + $0xc] sm:$0xf]
    %v442 = vld [vmem:[%s5 + $0x10] sm:$0xf]
    %v443 = vld [vmem:[%s5 + $0x14] sm:$0xf]
    %v444 = vld [vmem:[%s5 + $0x18] sm:$0xf]
    %v445 = vld [vmem:[%s5 + $0x1c] sm:$0xf]
    %v446 = vld [vmem:[%s6] sm:$0x1]
    %v448 = vlaneseq
    %v449 = vshrl.u32 %v448, 7
    %v450 = vsub.s32 0, %v449
    %v451 = vrot.slane %v446, %v450
    %v461 = vunpack.c.l.b16 %v438
    %v462 = vunpack.c.l.b16 %v439
    %v463 = vunpack.c.l.b16 %v440
    %v464 = vunpack.c.l.b16 %v441
    %v465 = vunpack.c.l.b16 %v442
    %v466 = vunpack.c.l.b16 %v443
    %v467 = vunpack.c.l.b16 %v444
    %v468 = vunpack.c.l.b16 %v445
    %v469 = vpack.c.b16 %v462, %v461
    %v470 = vpack.c.b16 %v464, %v463
    %v471 = vpack.c.b16 %v466, %v465
    %v472 = vpack.c.b16 %v468, %v467
    %v478 = vsel %vm292, %v430, 0
    %v481 = vsel %vm292, %v431, 0
    %v484 = vsel %vm292, %v432, 0
    %v487 = vsel %vm292, %v433, 0
    %v490 = vsel %vm292, %v434, 0
    %v493 = vsel %vm292, %v435, 0
    %v496 = vsel %vm292, %v436, 0
    %v499 = vsel %vm292, %v437, 0
    %501 = vmatprep.subr.bf16.mxu0 0
    %502 = vmatpush1.bf16.msra.mxu0 %v469
    %503 = vmatprep.subr.bf16.mxu0 0
    %504 = vmatpush1.bf16.msra.mxu0 %v470
    %505 = vmatprep.subr.bf16.mxu0 0
    %506 = vmatpush1.bf16.msra.mxu0 %v471
    %507 = vmatprep.subr.bf16.mxu0 0
    %508 = vmatpush1.bf16.msra.mxu0 %v472
    %509 = vmatprep.subr.bf16.mxu0 0
    %510 = vmatpush1.bf16.msra.mxu0 0
    %511 = vmatprep.subr.bf16.mxu0 0
    %512 = vmatpush1.bf16.msra.mxu0 0
    %513 = vmatprep.subr.bf16.mxu0 0
    %514 = vmatpush1.bf16.msra.mxu0 0
    %515 = vmatprep.subr.bf16.mxu0 0
    %516 = vmatpush1.bf16.msra.mxu0 0
    %517 = vmatprep.subr.bf16.mxu0 0
    %518 = vmatpush1.bf16.msra.mxu0 0
    %519 = vmatprep.subr.bf16.mxu0 0
    %520 = vmatpush1.bf16.msra.mxu0 0
    %521 = vmatprep.subr.bf16.mxu0 0
    %522 = vmatpush1.bf16.msra.mxu0 0
    %523 = vmatprep.subr.bf16.mxu0 0
    %524 = vmatpush1.bf16.msra.mxu0 0
    %525 = vmatprep.subr.bf16.mxu0 0
    %526 = vmatpush1.bf16.msra.mxu0 0
    %527 = vmatprep.subr.bf16.mxu0 0
    %528 = vmatpush1.bf16.msra.mxu0 0
    %529 = vmatprep.subr.bf16.mxu0 0
    %530 = vmatpush1.bf16.msra.mxu0 0
    %531 = vmatprep.subr.bf16.mxu0 0
    %532 = vmatpush1.bf16.msra.mxu0 0
    %533 = vmatprep.mubr.bf16.mxu0 0
    %534 = vmatmul.mubr.bf16.gmra.mrb[0].mxu0 %v478
    %v535 = vpop.f32.mrb[0].mxu0
    %v536 = vadd.f32 %v451, %v535
    %v537 = vpop.f32.mrb[0].mxu0
    %v538 = vpop.f32.mrb[0].mxu0
    %v539 = vadd.f32 %v451, %v538
    %v540 = vpop.f32.mrb[0].mxu0
    %541 = vmatprep.mubr.bf16.mxu0 0
    %542 = vmatmul.mubr.bf16.gmra.mrb[0].mxu0 %v481
    %v543 = vpop.f32.mrb[0].mxu0
    %v544 = vadd.f32 %v451, %v543
    %v545 = vpop.f32.mrb[0].mxu0
    %v546 = vpop.f32.mrb[0].mxu0
    %v547 = vadd.f32 %v451, %v546
    %v548 = vpop.f32.mrb[0].mxu0
    %549 = vmatprep.mubr.bf16.mxu0 0
    %550 = vmatmul.mubr.bf16.gmra.mrb[0].mxu0 %v484
    %v551 = vpop.f32.mrb[0].mxu0
    %v552 = vadd.f32 %v451, %v551
    %v553 = vpop.f32.mrb[0].mxu0
    %v554 = vpop.f32.mrb[0].mxu0
    %v555 = vadd.f32 %v451, %v554
    %v556 = vpop.f32.mrb[0].mxu0
    %557 = vmatprep.mubr.bf16.mxu0 0
    %558 = vmatmul.mubr.bf16.gmra.mrb[0].mxu0 %v487
    %v559 = vpop.f32.mrb[0].mxu0
    %v560 = vadd.f32 %v451, %v559
    %v561 = vpop.f32.mrb[0].mxu0
    %v562 = vpop.f32.mrb[0].mxu0
    %v563 = vadd.f32 %v451, %v562
    %v564 = vpop.f32.mrb[0].mxu0
    %565 = vmatprep.mubr.bf16.mxu0 0
    %566 = vmatmul.mubr.bf16.gmra.mrb[0].mxu0 %v490
    %v567 = vpop.f32.mrb[0].mxu0
    %v568 = vadd.f32 %v451, %v567
    %v569 = vpop.f32.mrb[0].mxu0
    %v570 = vpop.f32.mrb[0].mxu0
    %v571 = vadd.f32 %v451, %v570
    %v572 = vpop.f32.mrb[0].mxu0
    %573 = vmatprep.mubr.bf16.mxu0 0
    %574 = vmatmul.mubr.bf16.gmra.mrb[0].mxu0 %v493
    %v575 = vpop.f32.mrb[0].mxu0
    %v576 = vadd.f32 %v451, %v575
    %v577 = vpop.f32.mrb[0].mxu0
    %v578 = vpop.f32.mrb[0].mxu0
    %v579 = vadd.f32 %v451, %v578
    %v580 = vpop.f32.mrb[0].mxu0
    %581 = vmatprep.mubr.bf16.mxu0 0
    %582 = vmatmul.mubr.bf16.gmra.mrb[0].mxu0 %v496
    %v583 = vpop.f32.mrb[0].mxu0
    %v584 = vadd.f32 %v451, %v583
    %v585 = vpop.f32.mrb[0].mxu0
    %v586 = vpop.f32.mrb[0].mxu0
    %v587 = vadd.f32 %v451, %v586
    %v588 = vpop.f32.mrb[0].mxu0
    %589 = vmatprep.mubr.bf16.mxu0 0
    %590 = vmatmul.mubr.bf16.gmra.mrb[0].mxu0 %v499
    %v591 = vpop.f32.mrb[0].mxu0
    %v592 = vadd.f32 %v451, %v591
    %v593 = vpop.f32.mrb[0].mxu0
    %v594 = vpop.f32.mrb[0].mxu0
    %v595 = vadd.f32 %v451, %v594
    %v596 = vpop.f32.mrb[0].mxu0
    %597 = vdwg.mxu0
    %598 = vmax.xlane.f32.xlu0 %v536
    %v599 = vpop.xlane.xlu0 %598
    %600 = vmax.xlane.f32.xlu0 %v539
    %v601 = vpop.xlane.xlu0 %600
    %602 = vmax.xlane.f32.xlu0 %v544
    %v603 = vpop.xlane.xlu0 %602
    %604 = vmax.xlane.f32.xlu0 %v547
    %v605 = vpop.xlane.xlu0 %604
    %606 = vmax.xlane.f32.xlu0 %v552
    %v607 = vpop.xlane.xlu0 %606
    %608 = vmax.xlane.f32.xlu0 %v555
    %v609 = vpop.xlane.xlu0 %608
    %610 = vmax.xlane.f32.xlu0 %v560
    %v611 = vpop.xlane.xlu0 %610
    %612 = vmax.xlane.f32.xlu0 %v563
    %v613 = vpop.xlane.xlu0 %612
    %614 = vmax.xlane.f32.xlu0 %v568
    %v615 = vpop.xlane.xlu0 %614
    %616 = vmax.xlane.f32.xlu0 %v571
    %v617 = vpop.xlane.xlu0 %616
    %618 = vmax.xlane.f32.xlu0 %v576
    %v619 = vpop.xlane.xlu0 %618
    %620 = vmax.xlane.f32.xlu0 %v579
    %v621 = vpop.xlane.xlu0 %620
    %622 = vmax.xlane.f32.xlu0 %v584
    %v623 = vpop.xlane.xlu0 %622
    %624 = vmax.xlane.f32.xlu0 %v587
    %v625 = vpop.xlane.xlu0 %624
    %626 = vmax.xlane.f32.xlu0 %v592
    %v627 = vpop.xlane.xlu0 %626
    %628 = vmax.xlane.f32.xlu0 %v595
    %v629 = vpop.xlane.xlu0 %628
    %v630 = vsub.f32 %v536, %v599
    %v631 = vsub.f32 %v539, %v601
    %v632 = vsub.f32 %v544, %v603
    %v633 = vsub.f32 %v547, %v605
    %v634 = vsub.f32 %v552, %v607
    %v635 = vsub.f32 %v555, %v609
    %v636 = vsub.f32 %v560, %v611
    %v637 = vsub.f32 %v563, %v613
    %v638 = vsub.f32 %v568, %v615
    %v639 = vsub.f32 %v571, %v617
    %v640 = vsub.f32 %v576, %v619
    %v641 = vsub.f32 %v579, %v621
    %v642 = vsub.f32 %v584, %v623
    %v643 = vsub.f32 %v587, %v625
    %v644 = vsub.f32 %v592, %v627
    %v645 = vsub.f32 %v595, %v629
    %v646 = vmul.f32 %v630, 1.442695
    %v647 = vpow.pop %v646
    %v648 = vmul.f32 %v631, 1.442695
    %v649 = vpow.pop %v648
    %v650 = vmul.f32 %v632, 1.442695
    %v651 = vpow.pop %v650
    %v652 = vmul.f32 %v633, 1.442695
    %v653 = vpow.pop %v652
    %v654 = vmul.f32 %v634, 1.442695
    %v655 = vpow.pop %v654
    %v656 = vmul.f32 %v635, 1.442695
    %v657 = vpow.pop %v656
    %v658 = vmul.f32 %v636, 1.442695
    %v659 = vpow.pop %v658
    %v660 = vmul.f32 %v637, 1.442695
    %v661 = vpow.pop %v660
    %v662 = vmul.f32 %v638, 1.442695
    %v663 = vpow.pop %v662
    %v664 = vmul.f32 %v639, 1.442695
    %v665 = vpow.pop %v664
    %v666 = vmul.f32 %v640, 1.442695
    %v667 = vpow.pop %v666
    %v668 = vmul.f32 %v641, 1.442695
    %v669 = vpow.pop %v668
    %v670 = vmul.f32 %v642, 1.442695
    %v671 = vpow.pop %v670
    %v672 = vmul.f32 %v643, 1.442695
    %v673 = vpow.pop %v672
    %v674 = vmul.f32 %v644, 1.442695
    %v675 = vpow.pop %v674
    %v676 = vmul.f32 %v645, 1.442695
    %v677 = vpow.pop %v676
    %678 = vadd.xlane.f32.xlu0 %v647
    %v679 = vpop.xlane.xlu0 %678
    %680 = vadd.xlane.f32.xlu0 %v649
    %v681 = vpop.xlane.xlu0 %680
    %682 = vadd.xlane.f32.xlu0 %v651
    %v683 = vpop.xlane.xlu0 %682
    %684 = vadd.xlane.f32.xlu0 %v653
    %v685 = vpop.xlane.xlu0 %684
    %686 = vadd.xlane.f32.xlu0 %v655
    %v687 = vpop.xlane.xlu0 %686
    %688 = vadd.xlane.f32.xlu0 %v657
    %v689 = vpop.xlane.xlu0 %688
    %690 = vadd.xlane.f32.xlu0 %v659
    %v691 = vpop.xlane.xlu0 %690
    %692 = vadd.xlane.f32.xlu0 %v661
    %v693 = vpop.xlane.xlu0 %692
    %694 = vadd.xlane.f32.xlu0 %v663
    %v695 = vpop.xlane.xlu0 %694
    %696 = vadd.xlane.f32.xlu0 %v665
    %v697 = vpop.xlane.xlu0 %696
    %698 = vadd.xlane.f32.xlu0 %v667
    %v699 = vpop.xlane.xlu0 %698
    %700 = vadd.xlane.f32.xlu0 %v669
    %v701 = vpop.xlane.xlu0 %700
    %702 = vadd.xlane.f32.xlu0 %v671
    %v703 = vpop.xlane.xlu0 %702
    %704 = vadd.xlane.f32.xlu0 %v673
    %v705 = vpop.xlane.xlu0 %704
    %706 = vadd.xlane.f32.xlu0 %v675
    %v707 = vpop.xlane.xlu0 %706
    %708 = vadd.xlane.f32.xlu0 %v677
    %v709 = vpop.xlane.xlu0 %708
    %v710 = vrcp.pop %v679
    %v711 = vmul.f32 %v647, %v710
    %v712 = vrcp.pop %v681
    %v713 = vmul.f32 %v649, %v712
    %v714 = vrcp.pop %v683
    %v715 = vmul.f32 %v651, %v714
    %v716 = vrcp.pop %v685
    %v717 = vmul.f32 %v653, %v716
    %v718 = vrcp.pop %v687
    %v719 = vmul.f32 %v655, %v718
    %v720 = vrcp.pop %v689
    %v721 = vmul.f32 %v657, %v720
    %v722 = vrcp.pop %v691
    %v723 = vmul.f32 %v659, %v722
    %v724 = vrcp.pop %v693
    %v725 = vmul.f32 %v661, %v724
    %v726 = vrcp.pop %v695
    %v727 = vmul.f32 %v663, %v726
    %v728 = vrcp.pop %v697
    %v729 = vmul.f32 %v665, %v728
    %v730 = vrcp.pop %v699
    %v731 = vmul.f32 %v667, %v730
    %v732 = vrcp.pop %v701
    %v733 = vmul.f32 %v669, %v732
    %v734 = vrcp.pop %v703
    %v735 = vmul.f32 %v671, %v734
    %v736 = vrcp.pop %v705
    %v737 = vmul.f32 %v673, %v736
    %v738 = vrcp.pop %v707
    %v739 = vmul.f32 %v675, %v738
    %v740 = vrcp.pop %v709
    %v741 = vmul.f32 %v677, %v740
    %v742 = vpack.c.bf16 %v713, %v711
    %v743 = vpack.c.bf16 %v717, %v715
    %v744 = vpack.c.bf16 %v721, %v719
    %v745 = vpack.c.bf16 %v725, %v723
    %v746 = vpack.c.bf16 %v729, %v727
    %v747 = vpack.c.bf16 %v733, %v731
    %v748 = vpack.c.bf16 %v737, %v735
    %v749 = vpack.c.bf16 %v741, %v739
    %v758 = vunpack.c.l.b16 %v742
    %v759 = vunpack.c.h.b16 %v742
    %v760 = vunpack.c.l.b16 %v743
    %v761 = vunpack.c.h.b16 %v743
    %v762 = vunpack.c.l.b16 %v744
    %v763 = vunpack.c.h.b16 %v744
    %v764 = vunpack.c.l.b16 %v745
    %v765 = vunpack.c.h.b16 %v745
    %v766 = vunpack.c.l.b16 %v746
    %v767 = vunpack.c.h.b16 %v746
    %v768 = vunpack.c.l.b16 %v747
    %v769 = vunpack.c.h.b16 %v747
    %v770 = vunpack.c.l.b16 %v748
    %v771 = vunpack.c.h.b16 %v748
    %v772 = vunpack.c.l.b16 %v749
    %v773 = vunpack.c.h.b16 %v749
    %v774 = vpack.c.b16 %v758, %v758
    %v775 = vpack.c.b16 %v759, %v759
    %v776 = vpack.c.b16 %v760, %v760
    %v777 = vpack.c.b16 %v761, %v761
    %v778 = vpack.c.b16 %v762, %v762
    %v779 = vpack.c.b16 %v763, %v763
    %v780 = vpack.c.b16 %v764, %v764
    %v781 = vpack.c.b16 %v765, %v765
    %v782 = vpack.c.b16 %v766, %v766
    %v783 = vpack.c.b16 %v767, %v767
    %v784 = vpack.c.b16 %v768, %v768
    %v785 = vpack.c.b16 %v769, %v769
    %v786 = vpack.c.b16 %v770, %v770
    %v787 = vpack.c.b16 %v771, %v771
    %v788 = vpack.c.b16 %v772, %v772
    %v789 = vpack.c.b16 %v773, %v773
    %806 = vst [vmem:[#allocation2] sm:$0xf] %v774
    %807 = vst [vmem:[#allocation2 + $0x4] sm:$0xf] %v775
    %808 = vst [vmem:[#allocation2 + $0x8] sm:$0xf] %v776
    %809 = vst [vmem:[#allocation2 + $0xc] sm:$0xf] %v777
    %810 = vst [vmem:[#allocation2 + $0x10] sm:$0xf] %v778
    %811 = vst [vmem:[#allocation2 + $0x14] sm:$0xf] %v779
    %812 = vst [vmem:[#allocation2 + $0x18] sm:$0xf] %v780
    %813 = vst [vmem:[#allocation2 + $0x1c] sm:$0xf] %v781
    %814 = vst [vmem:[#allocation2 + $0x20] sm:$0xf] %v782
    %815 = vst [vmem:[#allocation2 + $0x24] sm:$0xf] %v783
    %816 = vst [vmem:[#allocation2 + $0x28] sm:$0xf] %v784
    %817 = vst [vmem:[#allocation2 + $0x2c] sm:$0xf] %v785
    %818 = vst [vmem:[#allocation2 + $0x30] sm:$0xf] %v786
    %819 = vst [vmem:[#allocation2 + $0x34] sm:$0xf] %v787
    %820 = vst [vmem:[#allocation2 + $0x38] sm:$0xf] %v788
    %821 = vst [vmem:[#allocation2 + $0x3c] sm:$0xf] %v789
    // Predicated region
    $region30: #{tpu_custom_call.1} parent=1 // pred_check
      _
    $region31: #{tpu_custom_call.1} parent=1 // pred_check_branch
      %823 = sbr.rel (0) target = $region33
    $region32: #{tpu_custom_call.1} parent=1 // pred_region
      %s825 = ssub.s32 1024, 1024
      %826 = vsyncadd [#allocation3], %s825
      %s827 = sshll.u32 [#allocation2], 4
      %s828 = int_to_ptr.vmem [resolvable:$true] %s827
      %833 = dma.vmem_to_hbm [thread:$0]  %s828, 1024, %s7, [#allocation3], 64, 64, 4
    $region33: #{tpu_custom_call.1} parent=1 // pred_fallthru
      _
    // Predicated region
    $region34: #{tpu_custom_call.1} parent=1 // pred_check
      _
    $region35: #{tpu_custom_call.1} parent=1 // pred_check_branch
      %835 = sbr.rel (0) target = $region37
    $region36: #{tpu_custom_call.1} parent=1 // pred_region
      %836 = dma.done [#allocation3], 1024
    $region37: #{tpu_custom_call.1} parent=1 // pred_fallthru
      _
    %837 = vsyncpa [#allocation3], 1

</llo_original>
